<compile_context>
chip_gen: v7x
topology: tpu7x:2x2x1
jax: 0.10.0
libtpu: 0.0.40
codegen_flags: <defaults>
</compile_context>

<pallas_src>
import functools

import jax
import jax.numpy as jnp
from jax import lax
from jax.experimental import pallas as pl
from jax.experimental.pallas import tpu as pltpu

# Sobel taps (same fixed parameters as the PyTorch module).
_SOBEL_X = ((-1.0, 0.0, 1.0),
            (-2.0, 0.0, 2.0),
            (-1.0, 0.0, 1.0))
_SOBEL_Y = ((-1.0, -2.0, -1.0),
            ( 0.0,  0.0,  0.0),
            ( 1.0,  2.0,  1.0))


def _gw_loss_kernel(x1_ref, x2_ref, out_ref, *, w, width, plane_len,
                    planes_per_block, total_planes):
    """One grid step = `planes_per_block` flattened planes of x1 and x2.

    x1_ref / x2_ref : (TB, N) with N = H*W on the lane axis (lane-dense).
    out_ref         : (1, 1, 1) partial-sum block, resident across the
                      sequential grid axis (accumulator pattern).
    """
    W, N, TB = width, plane_len, planes_per_block
    p = pl.program_id(0)
    s = pl.program_id(1)
    step = p * pl.num_programs(1) + s

    @pl.when(s == 0)
    def _init():
        out_ref[...] = jnp.zeros_like(out_ref)

    x1 = x1_ref[...].astype(jnp.float32)
    x2 = x2_ref[...].astype(jnp.float32)

    # Planes past B*C (ragged tail block / padded grid steps) contribute 0:
    # the conv is linear, so zeroing d zeroes Ix, Iy and the loss there.
    plane_idx = step * TB + lax.broadcasted_iota(jnp.int32, (TB, 1), 0)
    d = jnp.where(plane_idx < total_planes, x1 - x2, 0.0)

    # Boundary masks over the flat (row-major) in-plane index.  The wrapped
    # neighbours produced by the rolls below are exactly the positions the
    # PyTorch conv zero-pads, so masking them reproduces padding=1.
    pos = lax.broadcasted_iota(jnp.int32, (1, N), 1)
    col = pos % W
    m_up = pos >= W            # has a row above
    m_dn = pos < (N - W)       # has a row below
    m_lf = col > 0             # has a column to the left
    m_rt = col < (W - 1)       # has a column to the right

    # Neighbours via XLU lane rotation (positive static shifts only).
    d_up = jnp.where(m_up, pltpu.roll(d, shift=W, axis=1), 0.0)
    d_dn = jnp.where(m_dn, pltpu.roll(d, shift=N - W, axis=1), 0.0)

    # Separable Sobel: Kx = [1,2,1]^T (rows) x [-1,0,1] (cols),
    #                  Ky = [-1,0,1]^T (rows) x [1,2,1]  (cols).
    t = d_up + (d + d) + d_dn          # vertical [1, 2, 1]
    u = d_dn - d_up                    # vertical [-1, 0, 1]

    t_lf = jnp.where(m_lf, pltpu.roll(t, shift=1, axis=1), 0.0)
    t_rt = jnp.where(m_rt, pltpu.roll(t, shift=N - 1, axis=1), 0.0)
    u_lf = jnp.where(m_lf, pltpu.roll(u, shift=1, axis=1), 0.0)
    u_rt = jnp.where(m_rt, pltpu.roll(u, shift=N - 1, axis=1), 0.0)

    Ix = t_rt - t_lf                   # horizontal [-1, 0, 1]
    Iy = u_lf + (u + u) + u_rt         # horizontal [1, 2, 1]

    loss = (1.0 + w * jnp.abs(Ix)) * (1.0 + w * jnp.abs(Iy)) * jnp.abs(d)

    # One cross-lane reduction per step (XLU slot), accumulated into the
    # resident per-parallel-chunk output block.
    out_ref[...] += jnp.sum(loss).reshape(1, 1, 1)


def gw_loss(x1, x2, *, w=4, reduction="mean"):
    """Gradient Weighted Loss (scalar), matching GWLoss.forward semantics."""
    assert x1.shape == x2.shape and x1.ndim == 4
    B, C, H, W = x1.shape
    BC, N = B * C, H * W

    # The Sobel conv is depthwise (groups=C): every (b, c) plane is
    # independent.  Flatten each plane so the lane axis is N = H*W.
    x1f = x1.reshape(BC, N)
    x2f = x2.reshape(BC, N)

    # ---- generation-aware VMEM budgeting ---------------------------------
    try:
        vmem_cap = int(pltpu.get_tpu_info().vmem_capacity_bytes)
    except Exception:  # info unavailable -> assume smallest (v7x: 64 MiB/TC)
        vmem_cap = 64 * 1024 * 1024
    vmem_limit = min((3 * vmem_cap) // 4, 96 * 1024 * 1024)
    # 2 inputs x 2 pipeline buffers + ~6 live f32 temporaries per block.
    budget = min(4 * 1024 * 1024, max(256 * 1024, vmem_limit // 16))

    bytes_per_plane = N * 4                      # budget vs the f32 temporaries
    tb_cap = max(1, budget // bytes_per_plane)
    if tb_cap >= BC:
        tb = BC                                  # one block covers all planes
    elif tb_cap >= 16:
        tb = (tb_cap // 16) * 16                 # aligned sublane count
    elif tb_cap >= 8:
        tb = 8
    else:
        # TODO(synk): spatial tiling with halo exchange for very large planes.
        tb = min(8, BC)

    nb = -(-BC // tb)                            # cdiv: number of real blocks
    P = 2 if nb >= 2 else 1                      # 2 partials -> both v7x TCs
    S = -(-nb // P)

    if P * S == nb:
        def in_index(p, s):
            return (p * S + s, 0)
    else:                                        # padded step: clamp block,
        def in_index(p, s):                      # contribution masked in-kernel
            return (jnp.minimum(p * S + s, nb - 1), 0)

    kernel = functools.partial(
        _gw_loss_kernel, w=float(w), width=W, plane_len=N,
        planes_per_block=tb, total_planes=BC)

    partials = pl.pallas_call(
        kernel,
        out_shape=jax.ShapeDtypeStruct((P, 1, 1), jnp.float32),
        grid_spec=pltpu.PrefetchScalarGridSpec(
            num_scalar_prefetch=0,
            grid=(P, S),
            in_specs=[
                pl.BlockSpec((tb, N), in_index),
                pl.BlockSpec((tb, N), in_index),
            ],
            out_specs=pl.BlockSpec((1, 1, 1), lambda p, s: (p, 0, 0)),
        ),
        compiler_params=pltpu.CompilerParams(
            # NOTE: on v7x, verify the leading axis shards across both TCs;
            # if not, switch it to pltpu.CORE_PARALLEL.
            dimension_semantics=("parallel", "arbitrary"),
            vmem_limit_bytes=int(vmem_limit),
        ),
    )(x1f, x2f)

    total = jnp.sum(partials)
    if reduction == "mean":
        return total / jnp.float32(BC * N)
    return total


def _gw_loss_reference(x1, x2, *, w=4, reduction="mean"):
    """Pure-JAX reference using lax depthwise conv (for verification)."""
    B, C, H, W = x1.shape
    kx = jnp.array(_SOBEL_X, jnp.float32)
    ky = jnp.array(_SOBEL_Y, jnp.float32)
    wx = jnp.broadcast_to(kx, (C, 1, 3, 3))
    wy = jnp.broadcast_to(ky, (C, 1, 3, 3))
    dn = jax.lax.conv_dimension_numbers(x1.shape, wx.shape, ("NCHW", "OIHW", "NCHW"))
    conv = lambda x, k: jax.lax.conv_general_dilated(
        x, k, window_strides=(1, 1), padding=((1, 1), (1, 1)),
        dimension_numbers=dn, feature_group_count=C)
    dx = jnp.abs(conv(x1, wx) - conv(x2, wx))
    dy = jnp.abs(conv(x1, wy) - conv(x2, wy))
    loss = (1.0 + w * dx) * (1.0 + w * dy) * jnp.abs(x1 - x2)
    return jnp.mean(loss) if reduction == "mean" else jnp.sum(loss)


if __name__ == "__main__":
    key = jax.random.PRNGKey(0)
    k1, k2 = jax.random.split(key)
    B, C, H, W = 2, 4, 16, 16
    x1 = jax.random.normal(k1, (B, C, H, W), dtype=jnp.float32)
    x2 = jax.random.normal(k2, (B, C, H, W), dtype=jnp.float32)

    out = jax.block_until_ready(gw_loss(x1, x2, w=4, reduction="mean"))
    ref = jax.block_until_ready(_gw_loss_reference(x1, x2, w=4, reduction="mean"))
    assert jnp.allclose(out, ref, rtol=1e-5, atol=1e-5), (out, ref)

    out_sum = jax.block_until_ready(gw_loss(x1, x2, w=4, reduction="sum"))
    ref_sum = jax.block_until_ready(_gw_loss_reference(x1, x2, w=4, reduction="sum"))
    assert jnp.allclose(out_sum, ref_sum, rtol=1e-5, atol=1e-3), (out_sum, ref_sum)

    # bf16 inputs halve HBM traffic (v5e win); the kernel upcasts in-register.
    x1b = x1.astype(jnp.bfloat16)
    x2b = x2.astype(jnp.bfloat16)
    out_bf = jax.block_until_ready(gw_loss(x1b, x2b, w=4, reduction="mean"))
    ref_bf = jax.block_until_ready(_gw_loss_reference(
        x1b.astype(jnp.float32), x2b.astype(jnp.float32), w=4, reduction="mean"))
    assert jnp.allclose(out_bf, ref_bf, rtol=1e-4, atol=1e-4), (out_bf, ref_bf)

    print("KERNEL_OK")
</pallas_src>

<mosaic_0001>
module attributes {stable_mosaic.version = 11 : i64} {
  func.func @_gw_loss_kernel(%arg0: i32, %arg1: i32, %arg2: memref<8x256xf32, #tpu.memory_space<vmem>>, %arg3: memref<8x256xf32, #tpu.memory_space<vmem>>, %arg4: memref<1x1x1xf32, #tpu.memory_space<vmem>>) attributes {dimension_semantics = [#tpu.dimension_semantics<parallel>, #tpu.dimension_semantics<arbitrary>], iteration_bounds = array<i64: 1, 1>, scalar_prefetch = 0 : i64, scratch_operands = 0 : i64, tpu.core_type = #tpu.core_type<tc>, window_params = [{transform_indices = @transform_0, window_bounds = array<i64: 8, 256>}, {transform_indices = @transform_1, window_bounds = array<i64: 8, 256>}, {transform_indices = @transform_2, window_bounds = array<i64: 1, 1, 1>}]} {
    %c1_i32 = arith.constant 1 : i32
    %0 = arith.muli %arg0, %c1_i32 : i32
    %1 = arith.addi %0, %arg1 : i32
    %c0_i32 = arith.constant 0 : i32
    %2 = arith.cmpi eq, %arg1, %c0_i32 : i32
    %3 = arith.extui %2 : i1 to i32
    %c0_i32_0 = arith.constant 0 : i32
    %4 = arith.cmpi ne, %3, %c0_i32_0 : i32
    scf.if %4 {
      %cst_34 = arith.constant 0.000000e+00 : f32
      %102 = vector.broadcast %cst_34 : f32 to vector<1x1x1xf32>
      %c0_35 = arith.constant 0 : index
      %c0_36 = arith.constant 0 : index
      %c0_37 = arith.constant 0 : index
      %103 = vector.load %arg4[%c0_35, %c0_36, %c0_37] : memref<1x1x1xf32, #tpu.memory_space<vmem>>, vector<1x1x1xf32>
      tpu.vector_store %arg4[%c0_35, %c0_36, %c0_37], %102 {strides = array<i32>} : memref<1x1x1xf32, #tpu.memory_space<vmem>>, vector<1x1x1xf32>,
    } else {
    }
    %c0 = arith.constant 0 : index
    %c0_1 = arith.constant 0 : index
    %5 = vector.load %arg2[%c0, %c0_1] : memref<8x256xf32, #tpu.memory_space<vmem>>, vector<8x256xf32>
    %c0_2 = arith.constant 0 : index
    %c0_3 = arith.constant 0 : index
    %6 = vector.load %arg3[%c0_2, %c0_3] : memref<8x256xf32, #tpu.memory_space<vmem>>, vector<8x256xf32>
    %c8_i32 = arith.constant 8 : i32
    %7 = arith.muli %1, %c8_i32 : i32
    %8 = tpu.iota {dimensions = array<i32: 0>} : vector<8x1xi32>
    %9 = vector.broadcast %7 : i32 to vector<8x1xi32>
    %10 = arith.addi %9, %8 : vector<8x1xi32>
    %c8_i32_4 = arith.constant 8 : i32
    %11 = vector.broadcast %c8_i32_4 : i32 to vector<8x1xi32>
    %12 = arith.cmpi slt, %10, %11 : vector<8x1xi32>
    %13 = arith.subf %5, %6 : vector<8x256xf32>
    %cst = arith.constant 0.000000e+00 : f32
    %14 = vector.shape_cast %12 : vector<8x1xi1> to vector<8x1xi1>
    %15 = vector.broadcast %14 : vector<8x1xi1> to vector<8x256xi1>
    %16 = vector.broadcast %cst : f32 to vector<8x256xf32>
    %17 = arith.select %15, %13, %16 : vector<8x256xi1>, vector<8x256xf32>
    %18 = tpu.iota {dimensions = array<i32: 1>} : vector<1x256xi32>
    %c16_i32 = arith.constant 16 : i32
    %c0_i32_5 = arith.constant 0 : i32
    %19 = arith.cmpi eq, %c16_i32, %c0_i32_5 : i32
    %c1_i32_6 = arith.constant 1 : i32
    %20 = arith.select %19, %c1_i32_6, %c16_i32 : i32
    %21 = vector.broadcast %20 : i32 to vector<1x256xi32>
    %22 = arith.remsi %18, %21 : vector<1x256xi32>
    %c0_i32_7 = arith.constant 0 : i32
    %23 = vector.broadcast %c0_i32_7 : i32 to vector<1x256xi32>
    %24 = arith.cmpi ne, %22, %23 : vector<1x256xi32>
    %c0_i32_8 = arith.constant 0 : i32
    %25 = vector.broadcast %c0_i32_8 : i32 to vector<1x256xi32>
    %26 = arith.cmpi slt, %22, %25 : vector<1x256xi32>
    %c0_i32_9 = arith.constant 0 : i32
    %27 = arith.cmpi slt, %20, %c0_i32_9 : i32
    %28 = vector.broadcast %27 : i1 to vector<1x256xi1>
    %29 = vector.broadcast %28 : vector<1x256xi1> to vector<1x256xi1>
    %30 = arith.xori %26, %29 : vector<1x256xi1>
    %31 = arith.andi %30, %24 : vector<1x256xi1>
    %32 = vector.broadcast %20 : i32 to vector<1x256xi32>
    %33 = arith.addi %22, %32 : vector<1x256xi32>
    %34 = arith.select %31, %33, %22 : vector<1x256xi1>, vector<1x256xi32>
    %c16_i32_10 = arith.constant 16 : i32
    %35 = vector.broadcast %c16_i32_10 : i32 to vector<1x256xi32>
    %36 = arith.cmpi sge, %18, %35 : vector<1x256xi32>
    %c240_i32 = arith.constant 240 : i32
    %37 = vector.broadcast %c240_i32 : i32 to vector<1x256xi32>
    %38 = arith.cmpi slt, %18, %37 : vector<1x256xi32>
    %c0_i32_11 = arith.constant 0 : i32
    %39 = vector.broadcast %c0_i32_11 : i32 to vector<1x256xi32>
    %40 = arith.cmpi sgt, %34, %39 : vector<1x256xi32>
    %c15_i32 = arith.constant 15 : i32
    %41 = vector.broadcast %c15_i32 : i32 to vector<1x256xi32>
    %42 = arith.cmpi slt, %34, %41 : vector<1x256xi32>
    %c16_i32_12 = arith.constant 16 : i32
    %43 = tpu.dynamic_rotate %17 by %c16_i32_12 dim 1 : vector<8x256xf32>, i32 -> vector<8x256xf32>
    %cst_13 = arith.constant 0.000000e+00 : f32
    %44 = vector.shape_cast %36 : vector<1x256xi1> to vector<1x256xi1>
    %45 = vector.broadcast %44 : vector<1x256xi1> to vector<8x256xi1>
    %46 = vector.broadcast %cst_13 : f32 to vector<8x256xf32>
    %47 = arith.select %45, %43, %46 : vector<8x256xi1>, vector<8x256xf32>
    %c240_i32_14 = arith.constant 240 : i32
    %48 = tpu.dynamic_rotate %17 by %c240_i32_14 dim 1 : vector<8x256xf32>, i32 -> vector<8x256xf32>
    %cst_15 = arith.constant 0.000000e+00 : f32
    %49 = vector.shape_cast %38 : vector<1x256xi1> to vector<1x256xi1>
    %50 = vector.broadcast %49 : vector<1x256xi1> to vector<8x256xi1>
    %51 = vector.broadcast %cst_15 : f32 to vector<8x256xf32>
    %52 = arith.select %50, %48, %51 : vector<8x256xi1>, vector<8x256xf32>
    %53 = arith.addf %17, %17 : vector<8x256xf32>
    %54 = arith.addf %47, %53 : vector<8x256xf32>
    %55 = arith.addf %54, %52 : vector<8x256xf32>
    %56 = arith.subf %52, %47 : vector<8x256xf32>
    %c1_i32_16 = arith.constant 1 : i32
    %57 = tpu.dynamic_rotate %55 by %c1_i32_16 dim 1 : vector<8x256xf32>, i32 -> vector<8x256xf32>
    %cst_17 = arith.constant 0.000000e+00 : f32
    %58 = vector.shape_cast %40 : vector<1x256xi1> to vector<1x256xi1>
    %59 = vector.broadcast %58 : vector<1x256xi1> to vector<8x256xi1>
    %60 = vector.broadcast %cst_17 : f32 to vector<8x256xf32>
    %61 = arith.select %59, %57, %60 : vector<8x256xi1>, vector<8x256xf32>
    %c255_i32 = arith.constant 255 : i32
    %62 = tpu.dynamic_rotate %55 by %c255_i32 dim 1 : vector<8x256xf32>, i32 -> vector<8x256xf32>
    %cst_18 = arith.constant 0.000000e+00 : f32
    %63 = vector.shape_cast %42 : vector<1x256xi1> to vector<1x256xi1>
    %64 = vector.broadcast %63 : vector<1x256xi1> to vector<8x256xi1>
    %65 = vector.broadcast %cst_18 : f32 to vector<8x256xf32>
    %66 = arith.select %64, %62, %65 : vector<8x256xi1>, vector<8x256xf32>
    %c1_i32_19 = arith.constant 1 : i32
    %67 = tpu.dynamic_rotate %56 by %c1_i32_19 dim 1 : vector<8x256xf32>, i32 -> vector<8x256xf32>
    %cst_20 = arith.constant 0.000000e+00 : f32
    %68 = vector.shape_cast %40 : vector<1x256xi1> to vector<1x256xi1>
    %69 = vector.broadcast %68 : vector<1x256xi1> to vector<8x256xi1>
    %70 = vector.broadcast %cst_20 : f32 to vector<8x256xf32>
    %71 = arith.select %69, %67, %70 : vector<8x256xi1>, vector<8x256xf32>
    %c255_i32_21 = arith.constant 255 : i32
    %72 = tpu.dynamic_rotate %56 by %c255_i32_21 dim 1 : vector<8x256xf32>, i32 -> vector<8x256xf32>
    %cst_22 = arith.constant 0.000000e+00 : f32
    %73 = vector.shape_cast %42 : vector<1x256xi1> to vector<1x256xi1>
    %74 = vector.broadcast %73 : vector<1x256xi1> to vector<8x256xi1>
    %75 = vector.broadcast %cst_22 : f32 to vector<8x256xf32>
    %76 = arith.select %74, %72, %75 : vector<8x256xi1>, vector<8x256xf32>
    %77 = arith.subf %66, %61 : vector<8x256xf32>
    %78 = arith.addf %56, %56 : vector<8x256xf32>
    %79 = arith.addf %71, %78 : vector<8x256xf32>
    %80 = arith.addf %79, %76 : vector<8x256xf32>
    %81 = math.absf %77 : vector<8x256xf32>
    %cst_23 = arith.constant 4.000000e+00 : f32
    %82 = vector.broadcast %cst_23 : f32 to vector<8x256xf32>
    %83 = arith.mulf %82, %81 : vector<8x256xf32>
    %cst_24 = arith.constant 1.000000e+00 : f32
    %84 = vector.broadcast %cst_24 : f32 to vector<8x256xf32>
    %85 = arith.addf %84, %83 : vector<8x256xf32>
    %86 = math.absf %80 : vector<8x256xf32>
    %cst_25 = arith.constant 4.000000e+00 : f32
    %87 = vector.broadcast %cst_25 : f32 to vector<8x256xf32>
    %88 = arith.mulf %87, %86 : vector<8x256xf32>
    %cst_26 = arith.constant 1.000000e+00 : f32
    %89 = vector.broadcast %cst_26 : f32 to vector<8x256xf32>
    %90 = arith.addf %89, %88 : vector<8x256xf32>
    %91 = arith.mulf %85, %90 : vector<8x256xf32>
    %92 = math.absf %17 : vector<8x256xf32>
    %93 = arith.mulf %91, %92 : vector<8x256xf32>
    %c0_27 = arith.constant 0 : index
    %c0_28 = arith.constant 0 : index
    %c0_29 = arith.constant 0 : index
    %94 = vector.load %arg4[%c0_27, %c0_28, %c0_29] : memref<1x1x1xf32, #tpu.memory_space<vmem>>, vector<1x1x1xf32>
    %95 = vector.shape_cast %93 : vector<8x256xf32> to vector<1x8x256xf32>
    %cst_30 = arith.constant dense<0.000000e+00> : vector<1xf32>
    %96 = vector.multi_reduction <add>, %95, %cst_30 [1, 2] : vector<1x8x256xf32> to vector<1xf32>
    %97 = vector.shape_cast %96 : vector<1xf32> to vector<1x1x1xf32>
    %98 = vector.extract %97[0, 0, 0] : f32 from vector<1x1x1xf32>
    %99 = vector.broadcast %98 : f32 to vector<1x1x1xf32>
    %100 = arith.addf %94, %99 : vector<1x1x1xf32>
    %c0_31 = arith.constant 0 : index
    %c0_32 = arith.constant 0 : index
    %c0_33 = arith.constant 0 : index
    %101 = vector.load %arg4[%c0_31, %c0_32, %c0_33] : memref<1x1x1xf32, #tpu.memory_space<vmem>>, vector<1x1x1xf32>
    tpu.vector_store %arg4[%c0_31, %c0_32, %c0_33], %100 {strides = array<i32>} : memref<1x1x1xf32, #tpu.memory_space<vmem>>, vector<1x1x1xf32>,
    return
  }
  func.func @transform_0(%arg0: i32, %arg1: i32) -> (i32, i32) {
    %c1_i32 = arith.constant 1 : i32
    %0 = arith.muli %arg0, %c1_i32 : i32
    %1 = arith.addi %0, %arg1 : i32
    %c0_i32 = arith.constant 0 : i32
    %c0_i32_0 = arith.constant 0 : i32
    return %1, %c0_i32 : i32, i32
  }
  func.func @transform_1(%arg0: i32, %arg1: i32) -> (i32, i32) {
    %c1_i32 = arith.constant 1 : i32
    %0 = arith.muli %arg0, %c1_i32 : i32
    %1 = arith.addi %0, %arg1 : i32
    %c0_i32 = arith.constant 0 : i32
    %c0_i32_0 = arith.constant 0 : i32
    return %1, %c0_i32 : i32, i32
  }
  func.func @transform_2(%arg0: i32, %arg1: i32) -> (i32, i32, i32) {
    %c0_i32 = arith.constant 0 : i32
    %c0_i32_0 = arith.constant 0 : i32
    %c0_i32_1 = arith.constant 0 : i32
    return %arg0, %c0_i32, %c0_i32_0 : i32, i32, i32
  }
}

</mosaic_0001>

<llo_original>
// kernel: tpu_custom_call.1
$region0: #{tpu_custom_call.1}
  #allocation0 [shape = 'u32[]', space=smem, size = 0x4, offset = 0x4, fixed_abs, tag = 'smem constant byte address 0x4 - core index']
  #allocation1 [shape = 'u32[144,128]{1,0:T(1,128)}', space=vmem, size = 0x12000, scoped, tag = 'internal scratch']
  %s0 = inlined_call_operand.hbm [shape: f32[8,256], index: 0, kind: input, shape index: {}]
  %s1 = inlined_call_operand.hbm [shape: f32[8,256], index: 1, kind: input, shape index: {}]
  %s2 = inlined_call_operand.hbm [shape: f32[1,1,1], index: 2, kind: output, shape index: {}]
  %s3 = sld [smem:[#allocation0]]
  $region30: #{tpu_custom_call.1} parent=0
    _
  %s5 = ssub.s32 1, %s3
  %s6 = scalar_select 0, %s5, %s3
  $region1: #{tpu_custom_call.1} parent=0
    #allocation2 [shape = 'u8[8192]{0}', space=vmem, size = 0x2000, scoped, tag = 'input window, operand 0, single buffered']
    #allocation3 [shape = 's32[1]{0}', space=sflag, size = 0x4, scoped, tag = 'scoped memory for tpu_custom_call.1']
    #allocation4 [shape = 's32[1]{0}', space=sflag, size = 0x4, scoped, tag = 'scoped memory for tpu_custom_call.1']
    #allocation5 [shape = 'u8[8192]{0}', space=vmem, size = 0x2000, scoped, tag = 'input window, operand 1, single buffered']
    #allocation6 [shape = 's32[1]{0}', space=sflag, size = 0x4, scoped, tag = 'scoped memory for tpu_custom_call.1']
    #allocation7 [shape = 'u8[512]{0}', space=vmem, size = 0x400, scoped, tag = 'output window, operand 0, single buffered']
    %7 = vsyncpa [#allocation3], 0
    %8 = vsyncpa [#allocation6], 0
    %9 = vsyncpa [#allocation4], 0
    // Predicated region
    $region2: #{tpu_custom_call.1} parent=1 // pred_check
      _
    $region3: #{tpu_custom_call.1} parent=1 // pred_check_branch
      %11 = sbr.rel (0) target = $region5
    $region4: #{tpu_custom_call.1} parent=1 // pred_region
      %s12 = sadd.s32 0, 0
      %s14 = ssub.s32 256, 256
      %15 = vsyncadd [#allocation3], %s14
      %s16 = smul.addr %s12, 2
      %s17 = smul.addr %s16, 128
      %s18 = scalar_lea.hbm %s0, %s17
      %s20 = sshll.u32 [#allocation2], 4
      %s21 = int_to_ptr.vmem [resolvable:$true] %s20
      %23 = dma.hbm_to_vmem [thread:$0]  %s18, 256, %s21, [#allocation3]
    $region5: #{tpu_custom_call.1} parent=1 // pred_fallthru
      _
    // Predicated region
    $region6: #{tpu_custom_call.1} parent=1 // pred_check
      _
    $region7: #{tpu_custom_call.1} parent=1 // pred_check_branch
      %25 = sbr.rel (0) target = $region9
    $region8: #{tpu_custom_call.1} parent=1 // pred_region
      %s26 = sadd.s32 0, 0
      %s28 = ssub.s32 256, 256
      %29 = vsyncadd [#allocation6], %s28
      %s30 = smul.addr %s26, 2
      %s31 = smul.addr %s30, 128
      %s32 = scalar_lea.hbm %s1, %s31
      %s34 = sshll.u32 [#allocation5], 4
      %s35 = int_to_ptr.vmem [resolvable:$true] %s34
      %37 = dma.hbm_to_vmem [thread:$0]  %s32, 256, %s35, [#allocation6]
    $region9: #{tpu_custom_call.1} parent=1 // pred_fallthru
      _
    // Predicated region
    $region10: #{tpu_custom_call.1} parent=1 // pred_check
      _
    $region11: #{tpu_custom_call.1} parent=1 // pred_check_branch
      %39 = sbr.rel (0) target = $region13
    $region12: #{tpu_custom_call.1} parent=1 // pred_region
      %40 = dma.done [#allocation3], 256
    $region13: #{tpu_custom_call.1} parent=1 // pred_fallthru
      _
    // Predicated region
    $region14: #{tpu_custom_call.1} parent=1 // pred_check
      _
    $region15: #{tpu_custom_call.1} parent=1 // pred_check_branch
      %42 = sbr.rel (0) target = $region17
    $region16: #{tpu_custom_call.1} parent=1 // pred_region
      %43 = dma.done [#allocation6], 256
    $region17: #{tpu_custom_call.1} parent=1 // pred_fallthru
      _
    %s44 = sadd.s32 0, 0
    %s45 = sadd.s32 0, 0
    %s46 = sadd.s32 0, 0
    %p47 = scmp.eq.s32.totalorder 0, 0
    // Predicated region
    $region18: #{tpu_custom_call.1} parent=1 // pred_check
      %p48 = pneg %p47
    $region19: #{tpu_custom_call.1} parent=1 // pred_check_branch
      %50 = sbr.rel (%p48) target = $region21
    $region20: #{tpu_custom_call.1} parent=1 // pred_region
      %vm51 = vcmask 0
      %52 = vst.msk [vmem:[#allocation7] sm:$0x1] %vm51, 0.0
    $region21: #{tpu_custom_call.1} parent=1 // pred_fallthru
      _
    %v53 = vld [vmem:[#allocation2] sm:$0xff]
    %v54 = vld [vmem:[#allocation2 + $0x8] sm:$0xff]
    %v55 = vld [vmem:[#allocation5] sm:$0xff]
    %v56 = vld [vmem:[#allocation5 + $0x8] sm:$0xff]
    %s57 = smul.u32 %s46, 8
    %v58 = vlaneseq
    %v59 = vshrl.u32 %v58, 7
    %v60 = vstv %s57
    %v61 = vadd.s32 %v60, %v59
    %vm62 = vcmp.lt.s32.totalorder %v61, 8
    %v63 = vsub.f32 %v53, %v55
    %v64 = vsub.f32 %v54, %v56
    %v65 = vsel %vm62, 1, 0
    %vm66 = vcmp.eq.s32.totalorder %v65, 1
    %v67 = vsel %vm66, %v63, 0.0
    %v68 = vsel %vm66, %v64, 0.0
    %v69 = vlaneseq
    %v70 = vand.u32 %v69, 127
    %v71 = vadd.s32 %v70, 128
    %vm72 = vcmp.lt.s32.totalorder %v70, 0
    %v73 = vsub.s32 0, %v70
    %v74 = vsel %vm72, %v73, %v70
    %v75 = vshrl.u32 %v74, 4
    %v76 = vand.u32 %v74, 15
    %v77 = vsub.s32 0, %v76
    %v78 = vsel %vm72, %v77, %v76
    %vm79 = vcmp.lt.s32.totalorder %v71, 0
    %v80 = vsub.s32 0, %v71
    %v81 = vsel %vm79, %v80, %v71
    %v82 = vshrl.u32 %v81, 4
    %v83 = vand.u32 %v81, 15
    %v84 = vsub.s32 0, %v83
    %v85 = vsel %vm79, %v84, %v83
    %vm86 = vcmp.ne.s32.totalorder %v78, 0
    %vm87 = vcmp.ne.s32.totalorder %v85, 0
    %vm88 = vcmp.lt.s32.totalorder %v78, 0
    %vm89 = vcmp.lt.s32.totalorder %v85, 0
    %vm90 = vmand %vm88, %vm86
    %vm91 = vmand %vm89, %vm87
    %v92 = vadd.s32 %v78, 16
    %v93 = vadd.s32 %v85, 16
    %v94 = vsel %vm90, %v92, %v78
    %v95 = vsel %vm91, %v93, %v85
    %vm96 = vcmp.ge.s32.totalorder %v70, 16
    %vm97 = vcmp.ge.s32.totalorder %v71, 16
    %vm98 = vcmp.lt.s32.totalorder %v70, 240
    %vm99 = vcmp.lt.s32.totalorder %v71, 240
    %vm100 = vcmp.gt.s32.totalorder %v94, 0
    %vm101 = vcmp.gt.s32.totalorder %v95, 0
    %vm102 = vcmp.lt.s32.totalorder %v94, 15
    %vm103 = vcmp.lt.s32.totalorder %v95, 15
    %104 = vrot.lane.b32.xlu0 %v67, 16
    %v105 = vpop.permute.xlu0 %104
    %106 = vrot.lane.b32.xlu0 %v68, 16
    %v107 = vpop.permute.xlu0 %106
    %vm108 = vcmp.lt.s32.totalorder %v70, 16
    %v109 = vsel %vm108, %v105, %v107
    %v110 = vsel %vm108, %v107, %v105
    %v111 = vsel %vm96, 1, 0
    %v112 = vsel %vm97, 1, 0
    %vm113 = vcmp.eq.s32.totalorder %v111, 1
    %vm114 = vcmp.eq.s32.totalorder %v112, 1
    %v115 = vsel %vm113, %v110, 0.0
    %v116 = vsel %vm114, %v109, 0.0
    %117 = vrot.lane.b32.xlu0 %v67, 112
    %v118 = vpop.permute.xlu0 %117
    %119 = vrot.lane.b32.xlu0 %v68, 112
    %v120 = vpop.permute.xlu0 %119
    %vm121 = vcmp.lt.s32.totalorder %v70, 112
    %v122 = vsel %vm121, %v118, %v120
    %v123 = vsel %vm121, %v120, %v118
    %v124 = vsel %vm98, 1, 0
    %v125 = vsel %vm99, 1, 0
    %vm126 = vcmp.eq.s32.totalorder %v124, 1
    %vm127 = vcmp.eq.s32.totalorder %v125, 1
    %v128 = vsel %vm126, %v122, 0.0
    %v129 = vsel %vm127, %v123, 0.0
    %v130 = vadd.f32 %v67, %v67
    %v131 = vadd.f32 %v68, %v68
    %v132 = vadd.f32 %v115, %v130
    %v133 = vadd.f32 %v116, %v131
    %v134 = vadd.f32 %v132, %v128
    %v135 = vadd.f32 %v133, %v129
    %v136 = vsub.f32 %v128, %v115
    %v137 = vsub.f32 %v129, %v116
    %138 = vrot.lane.b32.xlu0 %v134, 1
    %v139 = vpop.permute.xlu0 %138
    %140 = vrot.lane.b32.xlu0 %v135, 1
    %v141 = vpop.permute.xlu0 %140
    %vm142 = vcmp.lt.s32.totalorder %v70, 1
    %v143 = vsel %vm142, %v139, %v141
    %v144 = vsel %vm142, %v141, %v139
    %v145 = vsel %vm100, 1, 0
    %v146 = vsel %vm101, 1, 0
    %vm147 = vcmp.eq.s32.totalorder %v145, 1
    %vm148 = vcmp.eq.s32.totalorder %v146, 1
    %v149 = vsel %vm147, %v144, 0.0
    %v150 = vsel %vm148, %v143, 0.0
    %151 = vrot.lane.b32.xlu0 %v134, 127
    %v152 = vpop.permute.xlu0 %151
    %153 = vrot.lane.b32.xlu0 %v135, 127
    %v154 = vpop.permute.xlu0 %153
    %vm155 = vcmp.lt.s32.totalorder %v70, 127
    %v156 = vsel %vm155, %v152, %v154
    %v157 = vsel %vm155, %v154, %v152
    %v158 = vsel %vm102, 1, 0
    %v159 = vsel %vm103, 1, 0
    %vm160 = vcmp.eq.s32.totalorder %v158, 1
    %vm161 = vcmp.eq.s32.totalorder %v159, 1
    %v162 = vsel %vm160, %v156, 0.0
    %v163 = vsel %vm161, %v157, 0.0
    %164 = vrot.lane.b32.xlu0 %v136, 1
    %v165 = vpop.permute.xlu0 %164
    %166 = vrot.lane.b32.xlu0 %v137, 1
    %v167 = vpop.permute.xlu0 %166
    %v168 = vsel %vm142, %v165, %v167
    %v169 = vsel %vm142, %v167, %v165
    %v170 = vsel %vm147, %v169, 0.0
    %v171 = vsel %vm148, %v168, 0.0
    %172 = vrot.lane.b32.xlu0 %v136, 127
    %v173 = vpop.permute.xlu0 %172
    %174 = vrot.lane.b32.xlu0 %v137, 127
    %v175 = vpop.permute.xlu0 %174
    %v176 = vsel %vm155, %v173, %v175
    %v177 = vsel %vm155, %v175, %v173
    %v178 = vsel %vm160, %v176, 0.0
    %v179 = vsel %vm161, %v177, 0.0
    %v180 = vsub.f32 %v162, %v149
    %v181 = vsub.f32 %v163, %v150
    %v182 = vadd.f32 %v136, %v136
    %v183 = vadd.f32 %v137, %v137
    %v184 = vadd.f32 %v170, %v182
    %v185 = vadd.f32 %v171, %v183
    %v186 = vadd.f32 %v184, %v178
    %v187 = vadd.f32 %v185, %v179
    %v188 = vand.u32 2147483647, %v180
    %v189 = vand.u32 2147483647, %v181
    %v190 = vmul.f32 %v188, 4.0
    %v191 = vmul.f32 %v189, 4.0
    %v192 = vadd.f32 %v190, 1.0
    %v193 = vadd.f32 %v191, 1.0
    %v194 = vand.u32 2147483647, %v186
    %v195 = vand.u32 2147483647, %v187
    %v196 = vmul.f32 %v194, 4.0
    %v197 = vmul.f32 %v195, 4.0
    %v198 = vadd.f32 %v196, 1.0
    %v199 = vadd.f32 %v197, 1.0
    %v200 = vmul.f32 %v192, %v198
    %v201 = vmul.f32 %v193, %v199
    %v202 = vand.u32 2147483647, %v67
    %v203 = vand.u32 2147483647, %v68
    %v204 = vmul.f32 %v200, %v202
    %v205 = vmul.f32 %v201, %v203
    %v206 = vld [vmem:[#allocation7] sm:$0x1]
    %v207 = vadd.f32 %v204, %v205
    %208 = vadd.xlane.f32.xlu0 %v207
    %v209 = vpop.xlane.xlu0 %208
    %v210 = vrot.slane %v209, 4
    %v211 = vadd.f32 %v209, %v210
    %v212 = vrot.slane %v211, 2
    %v213 = vadd.f32 %v211, %v212
    %v214 = vrot.slane %v213, 1
    %v215 = vadd.f32 %v213, %v214
    %s216 = vtos %v215
    %v217 = vstv %s216
    %v218 = vadd.f32 %v206, %v217
    %vm219 = vcmask 0
    %220 = vst.msk [vmem:[#allocation7] sm:$0x1] %vm219, %v218
    // Predicated region
    $region22: #{tpu_custom_call.1} parent=1 // pred_check
      _
    $region23: #{tpu_custom_call.1} parent=1 // pred_check_branch
      %222 = sbr.rel (0) target = $region25
    $region24: #{tpu_custom_call.1} parent=1 // pred_region
      %s224 = ssub.s32 16, 16
      %225 = vsyncadd [#allocation4], %s224
      %s227 = sshll.u32 [#allocation7], 4
      %s228 = int_to_ptr.vmem [resolvable:$true] %s227
      %230 = dma.vmem_to_hbm [thread:$0]  %s228, 16, %s2, [#allocation4]
    $region25: #{tpu_custom_call.1} parent=1 // pred_fallthru
      _
    // Predicated region
    $region26: #{tpu_custom_call.1} parent=1 // pred_check
      _
    $region27: #{tpu_custom_call.1} parent=1 // pred_check_branch
      %232 = sbr.rel (0) target = $region29
    $region28: #{tpu_custom_call.1} parent=1 // pred_region
      %233 = dma.done [#allocation4], 16
    $region29: #{tpu_custom_call.1} parent=1 // pred_fallthru
      _
    %234 = vsyncpa [#allocation3], 1
    %235 = vsyncpa [#allocation6], 1
    %236 = vsyncpa [#allocation4], 1

</llo_original>
